<compile_context>
chip_gen: v7x
topology: tpu7x:2x2x1
jax: 0.10.0
libtpu: 0.0.40
codegen_flags: <defaults>
</compile_context>

<pallas_src>
import jax
import jax.numpy as jnp
from jax import lax, random
from jax.experimental import pallas as pl
from jax.experimental.pallas import tpu as pltpu


_BN_EPS = 1e-5


def _shift_lanes(a, s):
    """result[:, m] = a[:, m + s] when 0 <= m + s < M, else 0 (s is static)."""
    if s == 0:
        return a
    c, m = a.shape
    z = jnp.zeros((c, abs(s)), a.dtype)
    if s > 0:
        return jnp.concatenate([a[:, s:], z], axis=1)
    return jnp.concatenate([z, a[:, : m + s]], axis=1)


# ------------------------------ fused kernel ------------------------------- #

def _make_c3_kernel(n_bottlenecks, width):
    """Factory: fused C3Pruned forward; one image (channel-major (C, M)) per step."""

    def kernel(*refs):
        it = iter(refs)
        x_ref = next(it)                         # (1, Cin, M)      bf16
        w1_ref, b1_ref = next(it), next(it)      # (c1, Cin) bf16, (c1, 1) f32
        w2_ref, b2_ref = next(it), next(it)      # (c2, Cin) bf16, (c2, 1) f32
        m_refs = [(next(it), next(it), next(it), next(it))
                  for _ in range(n_bottlenecks)]
        w3a_ref, w3b_ref, b3_ref = next(it), next(it), next(it)
        out_ref = next(it)                       # (1, cv3out, M)   f32

        m_total = x_ref.shape[2]

        def conv1x1(w_ref, act_bf16, b_ref):     # W @ act + b, SiLU (f32 epilogue)
            y = jnp.dot(w_ref[...], act_bf16, preferred_element_type=jnp.float32)
            y = y + b_ref[...]
            return y * jax.nn.sigmoid(y)

        x = x_ref[0]                                           # (Cin, M) bf16
        hid = conv1x1(w1_ref, x, b1_ref)                       # cv1 -> (c1, M) f32
        y2 = conv1x1(w2_ref, x, b2_ref)                        # cv2 -> (c2, M) f32

        # Column masks for horizontal (dx) halos, built once in-kernel (no HBM
        # mask inputs).  Vertical (dy) halos come for free from the zero-fill
        # of _shift_lanes across the M boundary.
        col = lax.broadcasted_iota(jnp.int32, (1, m_total), 1) % width
        keep_l = (col < width - 1).astype(jnp.float32)   # kill col==W-1 sources (dx=-1)
        keep_r = (col > 0).astype(jnp.float32)           # kill col==0   sources (dx=+1)

        for wb1_ref, bb1_ref, w9_ref, bb2_ref in m_refs:
            # bottleneck 1x1
            t = conv1x1(wb1_ref, hid.astype(jnp.bfloat16), bb1_ref)   # (c_i, M) f32
            # bottleneck 3x3 as ONE matmul with K = 9*c_i: stack the 9 shifted
            # (and column-masked) windows along the contraction (sublane) axis.
            srcs = {-1: t * keep_l, 0: t, 1: t * keep_r}
            wins = [_shift_lanes(srcs[dx], dy * width + dx)
                    for dy in (-1, 0, 1) for dx in (-1, 0, 1)]
            stacked = jnp.concatenate(wins, axis=0).astype(jnp.bfloat16)  # (9*c_i, M)
            acc = jnp.dot(w9_ref[...], stacked,
                          preferred_element_type=jnp.float32)            # (c1, M)
            acc = acc + bb2_ref[...]
            hid = hid + acc * jax.nn.sigmoid(acc)                 # shortcut add (f32)

        # cv3 on concat([hid, y2], channel) as split-K: no materialized concat.
        out = jnp.dot(w3a_ref[...], hid.astype(jnp.bfloat16),
                      preferred_element_type=jnp.float32)
        out = out + jnp.dot(w3b_ref[...], y2.astype(jnp.bfloat16),
                            preferred_element_type=jnp.float32)
        out = out + b3_ref[...]
        # M = 256 lanes on the last dim -> full-width (unmasked) vector stores.
        out_ref[0] = (out * jax.nn.sigmoid(out)).astype(out_ref.dtype)

    return kernel


# --------------------------- parameter construction ------------------------ #

def _conv_bn_params(key, cin, cout, k):
    """Deterministic Conv2d + BatchNorm2d params, BN folded into (w, b)."""
    k_w, k_g, k_b, k_m, k_v = random.split(key, 5)
    w = random.normal(k_w, (cout, cin, k, k), jnp.float32) * 0.1
    gamma = random.uniform(k_g, (cout,), jnp.float32, 0.5, 1.5)
    beta = random.normal(k_b, (cout,), jnp.float32) * 0.1
    mean = random.normal(k_m, (cout,), jnp.float32) * 0.1
    var = random.uniform(k_v, (cout,), jnp.float32, 0.5, 1.5)
    scale = gamma / jnp.sqrt(var + _BN_EPS)
    w_eff = w * scale[:, None, None, None]                     # (cout, cin, k, k)
    b_eff = beta - mean * scale                                # (cout,)
    p = {"w4d": w_eff, "b": b_eff.reshape(cout, 1)}            # channel-major bias
    if k == 1:
        p["w"] = w_eff.reshape(cout, cin)                      # (cout, cin)
    else:
        # merged-K 3x3 weight: column index = tap*cin + cin_idx,
        # tap = (dy+1)*3 + (dx+1) — matches the in-kernel stacking order.
        p["w9"] = jnp.transpose(w_eff, (0, 2, 3, 1)).reshape(cout, k * k * cin)
    return p


def make_c3_pruned_params(key, cv1cv2in, cv1out, cv2out, inner_cv1outs, cv3out):
    n = len(inner_cv1outs)
    keys = random.split(key, 3 + 2 * n)
    params = {
        "cv1": _conv_bn_params(keys[0], cv1cv2in, cv1out, 1),
        "cv2": _conv_bn_params(keys[1], cv1cv2in, cv2out, 1),
        "cv3": _conv_bn_params(keys[2], cv1out + cv2out, cv3out, 1),
        "m": [],
    }
    for i in range(n):
        b_cv1 = _conv_bn_params(keys[3 + 2 * i], cv1out, inner_cv1outs[i], 1)
        b_cv2 = _conv_bn_params(keys[4 + 2 * i], inner_cv1outs[i], cv1out, 3)
        params["m"].append((b_cv1, b_cv2))
    return params


# ------------------------------ forward pass ------------------------------- #

@jax.jit
def c3_pruned_forward(x_nchw, params):
    """Forward of C3Pruned.  Input/output NCHW (matches PyTorch)."""
    n, cin, h, w = x_nchw.shape
    m = h * w
    n_bn = len(params["m"])

    c1 = params["cv1"]["w"].shape[0]
    c2 = params["cv2"]["w"].shape[0]
    c3 = params["cv3"]["w"].shape[0]

    # NCHW is already channel-major: pure reshape, no transpose.
    x = x_nchw.reshape(n, cin, m).astype(jnp.bfloat16)

    def bf16(a):
        return a.astype(jnp.bfloat16)

    w3 = params["cv3"]["w"]                  # (cv3out, c1 + c2)
    inputs = [x,
              bf16(params["cv1"]["w"]), params["cv1"]["b"],
              bf16(params["cv2"]["w"]), params["cv2"]["b"]]
    for b_cv1, b_cv2 in params["m"]:
        inputs += [bf16(b_cv1["w"]), b_cv1["b"], bf16(b_cv2["w9"]), b_cv2["b"]]
    inputs += [bf16(w3[:, :c1]), bf16(w3[:, c1:]), params["cv3"]["b"]]

    in_specs = [pl.BlockSpec((1, cin, m), lambda i: (i, 0, 0))]
    for a in inputs[1:]:
        in_specs.append(pl.BlockSpec(a.shape, lambda i, nd=a.ndim: (0,) * nd))
    out_spec = pl.BlockSpec((1, c3, m), lambda i: (i, 0, 0))

    out = pl.pallas_call(
        _make_c3_kernel(n_bn, w),
        out_shape=jax.ShapeDtypeStruct((n, c3, m), jnp.float32),
        grid_spec=pltpu.PrefetchScalarGridSpec(
            num_scalar_prefetch=0,
            grid=(n,),
            in_specs=in_specs,
            out_specs=out_spec),
        compiler_params=pltpu.CompilerParams(
            dimension_semantics=("parallel",)),
    )(*inputs)

    return out.reshape(n, c3, h, w)                              # NCHW


# ------------------------- pure-JAX reference check ------------------------ #

def _conv_bn_silu_ref(x_nhwc, p):
    w_hwio = jnp.transpose(p["w4d"], (2, 3, 1, 0))
    y = lax.conv_general_dilated(
        x_nhwc, w_hwio, (1, 1), "SAME",
        dimension_numbers=("NHWC", "HWIO", "NHWC")) + p["b"].reshape(1, 1, 1, -1)
    return y * jax.nn.sigmoid(y)


def c3_pruned_reference(x_nchw, params):
    x = jnp.transpose(x_nchw, (0, 2, 3, 1)).astype(jnp.float32)
    y1 = _conv_bn_silu_ref(x, params["cv1"])
    y2 = _conv_bn_silu_ref(x, params["cv2"])
    hid = y1
    for b_cv1, b_cv2 in params["m"]:
        t = _conv_bn_silu_ref(hid, b_cv1)
        hid = hid + _conv_bn_silu_ref(t, b_cv2)      # shortcut (cv1out == cv2out)
    cat = jnp.concatenate([hid, y2], axis=-1)
    out = _conv_bn_silu_ref(cat, params["cv3"])
    return jnp.transpose(out, (0, 3, 1, 2))


# ---------------------------------- main ----------------------------------- #

if __name__ == "__main__":
    key = jax.random.PRNGKey(0)
    k_x, k_p = random.split(key)

    # Small shapes consistent with the module.
    N, C, H, W = 2, 4, 16, 16
    cv1cv2in, cv1out, cv2out = C, 8, 8
    inner_cv1outs = [8]          # n = 1 bottleneck
    cv3out = 8

    x = random.normal(k_x, (N, C, H, W), jnp.float32)
    params = make_c3_pruned_params(
        k_p, cv1cv2in, cv1out, cv2out, inner_cv1outs, cv3out)

    out = jax.block_until_ready(c3_pruned_forward(x, params))
    ref = jax.block_until_ready(c3_pruned_reference(x, params))

    assert out.shape == (N, cv3out, H, W), out.shape
    max_err = float(jnp.max(jnp.abs(out - ref)))
    # bf16 MXU operands -> relaxed tolerance vs the f32 reference.
    assert jnp.allclose(out, ref, rtol=5e-2, atol=5e-2), max_err

    print("KERNEL_OK")
</pallas_src>

<mosaic_0001>
module attributes {stable_mosaic.version = 11 : i64} {
  func.func @kernel(%arg0: i32, %arg1: memref<1x4x256xbf16, #tpu.memory_space<vmem>>, %arg2: memref<8x4xbf16, #tpu.memory_space<vmem>>, %arg3: memref<8x1xf32, #tpu.memory_space<vmem>>, %arg4: memref<8x4xbf16, #tpu.memory_space<vmem>>, %arg5: memref<8x1xf32, #tpu.memory_space<vmem>>, %arg6: memref<8x8xbf16, #tpu.memory_space<vmem>>, %arg7: memref<8x1xf32, #tpu.memory_space<vmem>>, %arg8: memref<8x72xbf16, #tpu.memory_space<vmem>>, %arg9: memref<8x1xf32, #tpu.memory_space<vmem>>, %arg10: memref<8x8xbf16, #tpu.memory_space<vmem>>, %arg11: memref<8x8xbf16, #tpu.memory_space<vmem>>, %arg12: memref<8x1xf32, #tpu.memory_space<vmem>>, %arg13: memref<1x8x256xf32, #tpu.memory_space<vmem>>) attributes {dimension_semantics = [#tpu.dimension_semantics<parallel>], iteration_bounds = array<i64: 2>, scalar_prefetch = 0 : i64, scratch_operands = 0 : i64, tpu.core_type = #tpu.core_type<tc>, window_params = [{transform_indices = @transform_0, window_bounds = array<i64: 1, 4, 256>}, {pipeline_mode = #tpu.pipeline_mode<synchronous>, transform_indices = @transform_1, window_bounds = array<i64: 8, 4>}, {pipeline_mode = #tpu.pipeline_mode<synchronous>, transform_indices = @transform_2, window_bounds = array<i64: 8, 1>}, {pipeline_mode = #tpu.pipeline_mode<synchronous>, transform_indices = @transform_3, window_bounds = array<i64: 8, 4>}, {pipeline_mode = #tpu.pipeline_mode<synchronous>, transform_indices = @transform_4, window_bounds = array<i64: 8, 1>}, {pipeline_mode = #tpu.pipeline_mode<synchronous>, transform_indices = @transform_5, window_bounds = array<i64: 8, 8>}, {pipeline_mode = #tpu.pipeline_mode<synchronous>, transform_indices = @transform_6, window_bounds = array<i64: 8, 1>}, {pipeline_mode = #tpu.pipeline_mode<synchronous>, transform_indices = @transform_7, window_bounds = array<i64: 8, 72>}, {pipeline_mode = #tpu.pipeline_mode<synchronous>, transform_indices = @transform_8, window_bounds = array<i64: 8, 1>}, {pipeline_mode = #tpu.pipeline_mode<synchronous>, transform_indices = @transform_9, window_bounds = array<i64: 8, 8>}, {pipeline_mode = #tpu.pipeline_mode<synchronous>, transform_indices = @transform_10, window_bounds = array<i64: 8, 8>}, {pipeline_mode = #tpu.pipeline_mode<synchronous>, transform_indices = @transform_11, window_bounds = array<i64: 8, 1>}, {transform_indices = @transform_12, window_bounds = array<i64: 1, 8, 256>}]} {
    %c0 = arith.constant 0 : index
    %c0_0 = arith.constant 0 : index
    %c0_1 = arith.constant 0 : index
    %0 = vector.load %arg1[%c0, %c0_0, %c0_1] : memref<1x4x256xbf16, #tpu.memory_space<vmem>>, vector<1x4x256xbf16>
    %1 = vector.shape_cast %0 : vector<1x4x256xbf16> to vector<4x256xbf16>
    %c0_2 = arith.constant 0 : index
    %c0_3 = arith.constant 0 : index
    %2 = vector.load %arg2[%c0_2, %c0_3] : memref<8x4xbf16, #tpu.memory_space<vmem>>, vector<8x4xbf16>
    %cst = arith.constant dense<0.000000e+00> : vector<8x256xf32>
    %3 = tpu.matmul %2, %1, %cst {dimension_numbers = #tpu.dot_dimension_numbers<[1], [0], [0], [1], [0, 0, 1, 1], [], []>} : vector<8x4xbf16>, vector<4x256xbf16>, vector<8x256xf32> -> vector<8x256xf32>
    %c0_4 = arith.constant 0 : index
    %c0_5 = arith.constant 0 : index
    %4 = vector.load %arg3[%c0_4, %c0_5] : memref<8x1xf32, #tpu.memory_space<vmem>>, vector<8x1xf32>
    %5 = vector.broadcast %4 : vector<8x1xf32> to vector<8x256xf32>
    %6 = arith.addf %3, %5 : vector<8x256xf32>
    %7 = arith.negf %6 : vector<8x256xf32>
    %8 = math.exp %7 : vector<8x256xf32>
    %cst_6 = arith.constant 1.000000e+00 : f32
    %9 = vector.broadcast %cst_6 : f32 to vector<8x256xf32>
    %10 = arith.addf %9, %8 : vector<8x256xf32>
    %11 = arith.divf %9, %10 : vector<8x256xf32>
    %12 = arith.mulf %6, %11 : vector<8x256xf32>
    %c0_7 = arith.constant 0 : index
    %c0_8 = arith.constant 0 : index
    %13 = vector.load %arg4[%c0_7, %c0_8] : memref<8x4xbf16, #tpu.memory_space<vmem>>, vector<8x4xbf16>
    %cst_9 = arith.constant dense<0.000000e+00> : vector<8x256xf32>
    %14 = tpu.matmul %13, %1, %cst_9 {dimension_numbers = #tpu.dot_dimension_numbers<[1], [0], [0], [1], [0, 0, 1, 1], [], []>} : vector<8x4xbf16>, vector<4x256xbf16>, vector<8x256xf32> -> vector<8x256xf32>
    %c0_10 = arith.constant 0 : index
    %c0_11 = arith.constant 0 : index
    %15 = vector.load %arg5[%c0_10, %c0_11] : memref<8x1xf32, #tpu.memory_space<vmem>>, vector<8x1xf32>
    %16 = vector.broadcast %15 : vector<8x1xf32> to vector<8x256xf32>
    %17 = arith.addf %14, %16 : vector<8x256xf32>
    %18 = arith.negf %17 : vector<8x256xf32>
    %19 = math.exp %18 : vector<8x256xf32>
    %cst_12 = arith.constant 1.000000e+00 : f32
    %20 = vector.broadcast %cst_12 : f32 to vector<8x256xf32>
    %21 = arith.addf %20, %19 : vector<8x256xf32>
    %22 = arith.divf %20, %21 : vector<8x256xf32>
    %23 = arith.mulf %17, %22 : vector<8x256xf32>
    %24 = tpu.iota {dimensions = array<i32: 1>} : vector<1x256xi32>
    %c16_i32 = arith.constant 16 : i32
    %c0_i32 = arith.constant 0 : i32
    %25 = arith.cmpi eq, %c16_i32, %c0_i32 : i32
    %c1_i32 = arith.constant 1 : i32
    %26 = arith.select %25, %c1_i32, %c16_i32 : i32
    %27 = vector.broadcast %26 : i32 to vector<1x256xi32>
    %28 = arith.remsi %24, %27 : vector<1x256xi32>
    %c0_i32_13 = arith.constant 0 : i32
    %29 = vector.broadcast %c0_i32_13 : i32 to vector<1x256xi32>
    %30 = arith.cmpi ne, %28, %29 : vector<1x256xi32>
    %c0_i32_14 = arith.constant 0 : i32
    %31 = vector.broadcast %c0_i32_14 : i32 to vector<1x256xi32>
    %32 = arith.cmpi slt, %28, %31 : vector<1x256xi32>
    %c0_i32_15 = arith.constant 0 : i32
    %33 = arith.cmpi slt, %26, %c0_i32_15 : i32
    %34 = vector.broadcast %33 : i1 to vector<1x256xi1>
    %35 = vector.broadcast %34 : vector<1x256xi1> to vector<1x256xi1>
    %36 = arith.xori %32, %35 : vector<1x256xi1>
    %37 = arith.andi %36, %30 : vector<1x256xi1>
    %38 = vector.broadcast %26 : i32 to vector<1x256xi32>
    %39 = arith.addi %28, %38 : vector<1x256xi32>
    %40 = arith.select %37, %39, %28 : vector<1x256xi1>, vector<1x256xi32>
    %c15_i32 = arith.constant 15 : i32
    %41 = vector.broadcast %c15_i32 : i32 to vector<1x256xi32>
    %42 = arith.cmpi slt, %40, %41 : vector<1x256xi32>
    %43 = arith.extui %42 : vector<1x256xi1> to vector<1x256xi32>
    %44 = arith.sitofp %43 : vector<1x256xi32> to vector<1x256xf32>
    %c0_i32_16 = arith.constant 0 : i32
    %45 = vector.broadcast %c0_i32_16 : i32 to vector<1x256xi32>
    %46 = arith.cmpi sgt, %40, %45 : vector<1x256xi32>
    %47 = arith.extui %46 : vector<1x256xi1> to vector<1x256xi32>
    %48 = arith.sitofp %47 : vector<1x256xi32> to vector<1x256xf32>
    %49 = arith.truncf %12 : vector<8x256xf32> to vector<8x256xbf16>
    %c0_17 = arith.constant 0 : index
    %c0_18 = arith.constant 0 : index
    %50 = vector.load %arg6[%c0_17, %c0_18] : memref<8x8xbf16, #tpu.memory_space<vmem>>, vector<8x8xbf16>
    %cst_19 = arith.constant dense<0.000000e+00> : vector<8x256xf32>
    %51 = tpu.matmul %50, %49, %cst_19 {dimension_numbers = #tpu.dot_dimension_numbers<[1], [0], [0], [1], [0, 0, 1, 1], [], []>} : vector<8x8xbf16>, vector<8x256xbf16>, vector<8x256xf32> -> vector<8x256xf32>
    %c0_20 = arith.constant 0 : index
    %c0_21 = arith.constant 0 : index
    %52 = vector.load %arg7[%c0_20, %c0_21] : memref<8x1xf32, #tpu.memory_space<vmem>>, vector<8x1xf32>
    %53 = vector.broadcast %52 : vector<8x1xf32> to vector<8x256xf32>
    %54 = arith.addf %51, %53 : vector<8x256xf32>
    %55 = arith.negf %54 : vector<8x256xf32>
    %56 = math.exp %55 : vector<8x256xf32>
    %cst_22 = arith.constant 1.000000e+00 : f32
    %57 = vector.broadcast %cst_22 : f32 to vector<8x256xf32>
    %58 = arith.addf %57, %56 : vector<8x256xf32>
    %59 = arith.divf %57, %58 : vector<8x256xf32>
    %60 = arith.mulf %54, %59 : vector<8x256xf32>
    %61 = vector.broadcast %44 : vector<1x256xf32> to vector<8x256xf32>
    %62 = arith.mulf %60, %61 : vector<8x256xf32>
    %63 = vector.broadcast %48 : vector<1x256xf32> to vector<8x256xf32>
    %64 = arith.mulf %60, %63 : vector<8x256xf32>
    %cst_23 = arith.constant 0.000000e+00 : f32
    %65 = vector.broadcast %cst_23 : f32 to vector<8x17xf32>
    %66 = vector.extract_strided_slice %62 {offsets = [0, 0], sizes = [8, 239], strides = [1, 1]} : vector<8x256xf32> to vector<8x239xf32>
    %67 = tpu.concatenate %65, %66 in 1 : vector<8x17xf32>, vector<8x239xf32> -> vector<8x256xf32>
    %cst_24 = arith.constant 0.000000e+00 : f32
    %68 = vector.broadcast %cst_24 : f32 to vector<8x16xf32>
    %69 = vector.extract_strided_slice %60 {offsets = [0, 0], sizes = [8, 240], strides = [1, 1]} : vector<8x256xf32> to vector<8x240xf32>
    %70 = tpu.concatenate %68, %69 in 1 : vector<8x16xf32>, vector<8x240xf32> -> vector<8x256xf32>
    %cst_25 = arith.constant 0.000000e+00 : f32
    %71 = vector.broadcast %cst_25 : f32 to vector<8x15xf32>
    %72 = vector.extract_strided_slice %64 {offsets = [0, 0], sizes = [8, 241], strides = [1, 1]} : vector<8x256xf32> to vector<8x241xf32>
    %73 = tpu.concatenate %71, %72 in 1 : vector<8x15xf32>, vector<8x241xf32> -> vector<8x256xf32>
    %cst_26 = arith.constant 0.000000e+00 : f32
    %74 = vector.broadcast %cst_26 : f32 to vector<8x1xf32>
    %75 = vector.extract_strided_slice %62 {offsets = [0, 0], sizes = [8, 255], strides = [1, 1]} : vector<8x256xf32> to vector<8x255xf32>
    %76 = tpu.concatenate %74, %75 in 1 : vector<8x1xf32>, vector<8x255xf32> -> vector<8x256xf32>
    %cst_27 = arith.constant 0.000000e+00 : f32
    %77 = vector.broadcast %cst_27 : f32 to vector<8x1xf32>
    %78 = vector.extract_strided_slice %64 {offsets = [0, 1], sizes = [8, 255], strides = [1, 1]} : vector<8x256xf32> to vector<8x255xf32>
    %79 = tpu.concatenate %78, %77 in 1 : vector<8x255xf32>, vector<8x1xf32> -> vector<8x256xf32>
    %cst_28 = arith.constant 0.000000e+00 : f32
    %80 = vector.broadcast %cst_28 : f32 to vector<8x15xf32>
    %81 = vector.extract_strided_slice %62 {offsets = [0, 15], sizes = [8, 241], strides = [1, 1]} : vector<8x256xf32> to vector<8x241xf32>
    %82 = tpu.concatenate %81, %80 in 1 : vector<8x241xf32>, vector<8x15xf32> -> vector<8x256xf32>
    %cst_29 = arith.constant 0.000000e+00 : f32
    %83 = vector.broadcast %cst_29 : f32 to vector<8x16xf32>
    %84 = vector.extract_strided_slice %60 {offsets = [0, 16], sizes = [8, 240], strides = [1, 1]} : vector<8x256xf32> to vector<8x240xf32>
    %85 = tpu.concatenate %84, %83 in 1 : vector<8x240xf32>, vector<8x16xf32> -> vector<8x256xf32>
    %cst_30 = arith.constant 0.000000e+00 : f32
    %86 = vector.broadcast %cst_30 : f32 to vector<8x17xf32>
    %87 = vector.extract_strided_slice %64 {offsets = [0, 17], sizes = [8, 239], strides = [1, 1]} : vector<8x256xf32> to vector<8x239xf32>
    %88 = tpu.concatenate %87, %86 in 1 : vector<8x239xf32>, vector<8x17xf32> -> vector<8x256xf32>
    %89 = tpu.concatenate %67, %70, %73, %76, %60, %79, %82, %85, %88 in 0 : vector<8x256xf32>, vector<8x256xf32>, vector<8x256xf32>, vector<8x256xf32>, vector<8x256xf32>, vector<8x256xf32>, vector<8x256xf32>, vector<8x256xf32>, vector<8x256xf32> -> vector<72x256xf32>
    %90 = arith.truncf %89 : vector<72x256xf32> to vector<72x256xbf16>
    %c0_31 = arith.constant 0 : index
    %c0_32 = arith.constant 0 : index
    %91 = vector.load %arg8[%c0_31, %c0_32] : memref<8x72xbf16, #tpu.memory_space<vmem>>, vector<8x72xbf16>
    %cst_33 = arith.constant dense<0.000000e+00> : vector<8x256xf32>
    %92 = tpu.matmul %91, %90, %cst_33 {dimension_numbers = #tpu.dot_dimension_numbers<[1], [0], [0], [1], [0, 0, 1, 1], [], []>} : vector<8x72xbf16>, vector<72x256xbf16>, vector<8x256xf32> -> vector<8x256xf32>
    %c0_34 = arith.constant 0 : index
    %c0_35 = arith.constant 0 : index
    %93 = vector.load %arg9[%c0_34, %c0_35] : memref<8x1xf32, #tpu.memory_space<vmem>>, vector<8x1xf32>
    %94 = vector.broadcast %93 : vector<8x1xf32> to vector<8x256xf32>
    %95 = arith.addf %92, %94 : vector<8x256xf32>
    %96 = arith.negf %95 : vector<8x256xf32>
    %97 = math.exp %96 : vector<8x256xf32>
    %cst_36 = arith.constant 1.000000e+00 : f32
    %98 = vector.broadcast %cst_36 : f32 to vector<8x256xf32>
    %99 = arith.addf %98, %97 : vector<8x256xf32>
    %100 = arith.divf %98, %99 : vector<8x256xf32>
    %101 = arith.mulf %95, %100 : vector<8x256xf32>
    %102 = arith.addf %12, %101 : vector<8x256xf32>
    %c0_37 = arith.constant 0 : index
    %c0_38 = arith.constant 0 : index
    %103 = vector.load %arg10[%c0_37, %c0_38] : memref<8x8xbf16, #tpu.memory_space<vmem>>, vector<8x8xbf16>
    %104 = arith.truncf %102 : vector<8x256xf32> to vector<8x256xbf16>
    %cst_39 = arith.constant dense<0.000000e+00> : vector<8x256xf32>
    %105 = tpu.matmul %103, %104, %cst_39 {dimension_numbers = #tpu.dot_dimension_numbers<[1], [0], [0], [1], [0, 0, 1, 1], [], []>} : vector<8x8xbf16>, vector<8x256xbf16>, vector<8x256xf32> -> vector<8x256xf32>
    %c0_40 = arith.constant 0 : index
    %c0_41 = arith.constant 0 : index
    %106 = vector.load %arg11[%c0_40, %c0_41] : memref<8x8xbf16, #tpu.memory_space<vmem>>, vector<8x8xbf16>
    %107 = arith.truncf %23 : vector<8x256xf32> to vector<8x256xbf16>
    %cst_42 = arith.constant dense<0.000000e+00> : vector<8x256xf32>
    %108 = tpu.matmul %106, %107, %cst_42 {dimension_numbers = #tpu.dot_dimension_numbers<[1], [0], [0], [1], [0, 0, 1, 1], [], []>} : vector<8x8xbf16>, vector<8x256xbf16>, vector<8x256xf32> -> vector<8x256xf32>
    %109 = arith.addf %105, %108 : vector<8x256xf32>
    %c0_43 = arith.constant 0 : index
    %c0_44 = arith.constant 0 : index
    %110 = vector.load %arg12[%c0_43, %c0_44] : memref<8x1xf32, #tpu.memory_space<vmem>>, vector<8x1xf32>
    %111 = vector.broadcast %110 : vector<8x1xf32> to vector<8x256xf32>
    %112 = arith.addf %109, %111 : vector<8x256xf32>
    %113 = arith.negf %112 : vector<8x256xf32>
    %114 = math.exp %113 : vector<8x256xf32>
    %cst_45 = arith.constant 1.000000e+00 : f32
    %115 = vector.broadcast %cst_45 : f32 to vector<8x256xf32>
    %116 = arith.addf %115, %114 : vector<8x256xf32>
    %117 = arith.divf %115, %116 : vector<8x256xf32>
    %118 = arith.mulf %112, %117 : vector<8x256xf32>
    %c0_46 = arith.constant 0 : index
    %c0_47 = arith.constant 0 : index
    %c0_48 = arith.constant 0 : index
    %119 = vector.load %arg13[%c0_46, %c0_47, %c0_48] : memref<1x8x256xf32, #tpu.memory_space<vmem>>, vector<1x8x256xf32>
    %120 = vector.shape_cast %119 : vector<1x8x256xf32> to vector<8x256xf32>
    %121 = vector.shape_cast %118 : vector<8x256xf32> to vector<1x8x256xf32>
    tpu.vector_store %arg13[%c0_46, %c0_47, %c0_48], %121 {strides = array<i32>} : memref<1x8x256xf32, #tpu.memory_space<vmem>>, vector<1x8x256xf32>,
    return
  }
  func.func @transform_0(%arg0: i32) -> (i32, i32, i32) {
    %c0_i32 = arith.constant 0 : i32
    %c0_i32_0 = arith.constant 0 : i32
    %c0_i32_1 = arith.constant 0 : i32
    return %arg0, %c0_i32, %c0_i32_0 : i32, i32, i32
  }
  func.func @transform_1(%arg0: i32) -> (i32, i32) {
    %c0_i32 = arith.constant 0 : i32
    %c0_i32_0 = arith.constant 0 : i32
    %c0_i32_1 = arith.constant 0 : i32
    return %c0_i32, %c0_i32_0 : i32, i32
  }
  func.func @transform_2(%arg0: i32) -> (i32, i32) {
    %c0_i32 = arith.constant 0 : i32
    %c0_i32_0 = arith.constant 0 : i32
    %c0_i32_1 = arith.constant 0 : i32
    return %c0_i32, %c0_i32_0 : i32, i32
  }
  func.func @transform_3(%arg0: i32) -> (i32, i32) {
    %c0_i32 = arith.constant 0 : i32
    %c0_i32_0 = arith.constant 0 : i32
    %c0_i32_1 = arith.constant 0 : i32
    return %c0_i32, %c0_i32_0 : i32, i32
  }
  func.func @transform_4(%arg0: i32) -> (i32, i32) {
    %c0_i32 = arith.constant 0 : i32
    %c0_i32_0 = arith.constant 0 : i32
    %c0_i32_1 = arith.constant 0 : i32
    return %c0_i32, %c0_i32_0 : i32, i32
  }
  func.func @transform_5(%arg0: i32) -> (i32, i32) {
    %c0_i32 = arith.constant 0 : i32
    %c0_i32_0 = arith.constant 0 : i32
    %c0_i32_1 = arith.constant 0 : i32
    return %c0_i32, %c0_i32_0 : i32, i32
  }
  func.func @transform_6(%arg0: i32) -> (i32, i32) {
    %c0_i32 = arith.constant 0 : i32
    %c0_i32_0 = arith.constant 0 : i32
    %c0_i32_1 = arith.constant 0 : i32
    return %c0_i32, %c0_i32_0 : i32, i32
  }
  func.func @transform_7(%arg0: i32) -> (i32, i32) {
    %c0_i32 = arith.constant 0 : i32
    %c0_i32_0 = arith.constant 0 : i32
    %c0_i32_1 = arith.constant 0 : i32
    return %c0_i32, %c0_i32_0 : i32, i32
  }
  func.func @transform_8(%arg0: i32) -> (i32, i32) {
    %c0_i32 = arith.constant 0 : i32
    %c0_i32_0 = arith.constant 0 : i32
    %c0_i32_1 = arith.constant 0 : i32
    return %c0_i32, %c0_i32_0 : i32, i32
  }
  func.func @transform_9(%arg0: i32) -> (i32, i32) {
    %c0_i32 = arith.constant 0 : i32
    %c0_i32_0 = arith.constant 0 : i32
    %c0_i32_1 = arith.constant 0 : i32
    return %c0_i32, %c0_i32_0 : i32, i32
  }
  func.func @transform_10(%arg0: i32) -> (i32, i32) {
    %c0_i32 = arith.constant 0 : i32
    %c0_i32_0 = arith.constant 0 : i32
    %c0_i32_1 = arith.constant 0 : i32
    return %c0_i32, %c0_i32_0 : i32, i32
  }
  func.func @transform_11(%arg0: i32) -> (i32, i32) {
    %c0_i32 = arith.constant 0 : i32
    %c0_i32_0 = arith.constant 0 : i32
    %c0_i32_1 = arith.constant 0 : i32
    return %c0_i32, %c0_i32_0 : i32, i32
  }
  func.func @transform_12(%arg0: i32) -> (i32, i32, i32) {
    %c0_i32 = arith.constant 0 : i32
    %c0_i32_0 = arith.constant 0 : i32
    %c0_i32_1 = arith.constant 0 : i32
    return %arg0, %c0_i32, %c0_i32_0 : i32, i32, i32
  }
}

</mosaic_0001>

<llo_original>
// kernel: c3_pruned_forward.1
$region0: #{c3_pruned_forward.1}
  #allocation0 [shape = 'u32[]', space=smem, size = 0x4, offset = 0x4, fixed_abs, tag = 'smem constant byte address 0x4 - core index']
  #allocation1 [shape = 'u32[144,128]{1,0:T(1,128)}', space=vmem, size = 0x12000, scoped, tag = 'internal scratch']
  %s0 = inlined_call_operand.vmem [shape: bf16[2,4,256], index: 0, kind: input, shape index: {}]
  %s1 = inlined_call_operand.vmem [shape: bf16[8,4], index: 1, kind: input, shape index: {}]
  %s2 = inlined_call_operand.vmem [shape: f32[8,1], index: 2, kind: input, shape index: {}]
  %s3 = inlined_call_operand.vmem [shape: bf16[8,4], index: 3, kind: input, shape index: {}]
  %s4 = inlined_call_operand.vmem [shape: f32[8,1], index: 4, kind: input, shape index: {}]
  %s5 = inlined_call_operand.vmem [shape: bf16[8,8], index: 5, kind: input, shape index: {}]
  %s6 = inlined_call_operand.vmem [shape: f32[8,1], index: 6, kind: input, shape index: {}]
  %s7 = inlined_call_operand.vmem [shape: bf16[8,72], index: 7, kind: input, shape index: {}]
  %s8 = inlined_call_operand.vmem [shape: f32[8,1], index: 8, kind: input, shape index: {}]
  %s9 = inlined_call_operand.vmem [shape: bf16[8,8], index: 9, kind: input, shape index: {}]
  %s10 = inlined_call_operand.vmem [shape: bf16[8,8], index: 10, kind: input, shape index: {}]
  %s11 = inlined_call_operand.vmem [shape: f32[8,1], index: 11, kind: input, shape index: {}]
  %s12 = inlined_call_operand.vmem [shape: f32[2,8,256], index: 12, kind: output, shape index: {}]
  %s13 = sld [smem:[#allocation0]]
  $region81: #{c3_pruned_forward.1} parent=0
    _
  %s15 = ssub.s32 1, %s13
  %s16 = scalar_select 0, %s15, %s13
  loop: start=0, step=1, limit=4
  $region2: #{c3_pruned_forward.1} parent=0 // loop_pre_header
    _
  $region3: #{c3_pruned_forward.1} parent=0 // loop_header
    %s18 = sphi 0, %s22
    %p19 = scmp.ge.s32.totalorder %s18, 4
    %s28 = sphi 0, %s30
    %s31 = sphi 0, %s28
    %s32 = sphi 0, %s31
    %s48 = sphi 0, %s32
    %s52 = sphi 0, %s52
    %s54 = sphi 0, %s52
    %s55 = sphi 0, %s54
    %s69 = sphi 0, %s55
    %s73 = sphi 0, %s73
    %s75 = sphi 0, %s73
    %s76 = sphi 0, %s75
    %s90 = sphi 0, %s76
    %s94 = sphi 0, %s94
    %s96 = sphi 0, %s94
    %s97 = sphi 0, %s96
    %s111 = sphi 0, %s97
    %s115 = sphi 0, %s115
    %s117 = sphi 0, %s115
    %s118 = sphi 0, %s117
    %s132 = sphi 0, %s118
    %s136 = sphi 0, %s136
    %s138 = sphi 0, %s136
    %s139 = sphi 0, %s138
    %s153 = sphi 0, %s139
    %s157 = sphi 0, %s157
    %s159 = sphi 0, %s157
    %s160 = sphi 0, %s159
    %s174 = sphi 0, %s160
    %s178 = sphi 0, %s178
    %s180 = sphi 0, %s178
    %s181 = sphi 0, %s180
    %s195 = sphi 0, %s181
    %s199 = sphi 0, %s199
    %s201 = sphi 0, %s199
    %s202 = sphi 0, %s201
    %s216 = sphi 0, %s202
    %s220 = sphi 0, %s220
    %s222 = sphi 0, %s220
    %s223 = sphi 0, %s222
    %s237 = sphi 0, %s223
    %s241 = sphi 0, %s241
    %s243 = sphi 0, %s241
    %s244 = sphi 0, %s243
    %s258 = sphi 0, %s244
    %s262 = sphi 0, %s262
    %s264 = sphi 0, %s262
    %s265 = sphi 0, %s264
    %s279 = sphi 0, %s265
    %s285 = sphi 0, %s287
    %s288 = sphi 0, %s285
    %s289 = sphi 0, %s288
    %s305 = sphi 0, %s289
  $region4: #{c3_pruned_forward.1} parent=0 // loop_header_branch
    %21 = sbr.rel (%p19) target = $region8
  $region5: #{c3_pruned_forward.1} parent=0 // loop_body
    %s23 = ssub.s32 %s18, 1
    %s24 = ssub.s32 %s18, 2
    %s25 = sadd.s32 %s18, 1
    %s26 = ssub.s32 %s18, %s25
    %p27 = scmp.eq.s32.totalorder %s26, 0
    %s29 = sadd.s32 %s28, 1
    %s30 = scalar_select %p27, %s28, %s29
    %p33 = pneg %p27
    %p34 = scmp.eq.s32.totalorder %s18, 1
    %p35 = por %p33, %p34
    %p36 = scmp.ne.s32.totalorder %s28, %s31
    %p37 = scmp.eq.s32.totalorder %s18, 0
    %p38 = por %p36, %p37
    %p39 = scmp.ne.s32.totalorder %s28, %s31
    %p40 = scmp.eq.s32.totalorder %s23, 1
    %p41 = por %p39, %p40
    %p42 = scmp.ne.s32.totalorder %s31, %s32
    %p43 = scmp.eq.s32.totalorder %s23, 0
    %p44 = por %p42, %p43
    %p45 = scmp.ne.s32.totalorder %s31, %s32
    %p46 = scmp.eq.s32.totalorder %s24, 1
    %p47 = por %p45, %p46
    %p49 = scmp.ne.s32.totalorder %s32, %s48
    %p50 = scmp.eq.s32.totalorder %s24, 0
    %p51 = por %p49, %p50
    %s53 = sadd.s32 %s52, 1
    %p56 = scmp.eq.s32.totalorder %s18, 1
    %p57 = scmp.ne.s32.totalorder %s52, %s54
    %p58 = scmp.eq.s32.totalorder %s18, 0
    %p59 = por %p57, %p58
    %p60 = scmp.ne.s32.totalorder %s52, %s54
    %p61 = scmp.eq.s32.totalorder %s23, 1
    %p62 = por %p60, %p61
    %p63 = scmp.ne.s32.totalorder %s54, %s55
    %p64 = scmp.eq.s32.totalorder %s23, 0
    %p65 = por %p63, %p64
    %p66 = scmp.ne.s32.totalorder %s54, %s55
    %p67 = scmp.eq.s32.totalorder %s24, 1
    %p68 = por %p66, %p67
    %p70 = scmp.ne.s32.totalorder %s55, %s69
    %p71 = scmp.eq.s32.totalorder %s24, 0
    %p72 = por %p70, %p71
    %s74 = sadd.s32 %s73, 1
    %p77 = scmp.eq.s32.totalorder %s18, 1
    %p78 = scmp.ne.s32.totalorder %s73, %s75
    %p79 = scmp.eq.s32.totalorder %s18, 0
    %p80 = por %p78, %p79
    %p81 = scmp.ne.s32.totalorder %s73, %s75
    %p82 = scmp.eq.s32.totalorder %s23, 1
    %p83 = por %p81, %p82
    %p84 = scmp.ne.s32.totalorder %s75, %s76
    %p85 = scmp.eq.s32.totalorder %s23, 0
    %p86 = por %p84, %p85
    %p87 = scmp.ne.s32.totalorder %s75, %s76
    %p88 = scmp.eq.s32.totalorder %s24, 1
    %p89 = por %p87, %p88
    %p91 = scmp.ne.s32.totalorder %s76, %s90
    %p92 = scmp.eq.s32.totalorder %s24, 0
    %p93 = por %p91, %p92
    %s95 = sadd.s32 %s94, 1
    %p98 = scmp.eq.s32.totalorder %s18, 1
    %p99 = scmp.ne.s32.totalorder %s94, %s96
    %p100 = scmp.eq.s32.totalorder %s18, 0
    %p101 = por %p99, %p100
    %p102 = scmp.ne.s32.totalorder %s94, %s96
    %p103 = scmp.eq.s32.totalorder %s23, 1
    %p104 = por %p102, %p103
    %p105 = scmp.ne.s32.totalorder %s96, %s97
    %p106 = scmp.eq.s32.totalorder %s23, 0
    %p107 = por %p105, %p106
    %p108 = scmp.ne.s32.totalorder %s96, %s97
    %p109 = scmp.eq.s32.totalorder %s24, 1
    %p110 = por %p108, %p109
    %p112 = scmp.ne.s32.totalorder %s97, %s111
    %p113 = scmp.eq.s32.totalorder %s24, 0
    %p114 = por %p112, %p113
    %s116 = sadd.s32 %s115, 1
    %p119 = scmp.eq.s32.totalorder %s18, 1
    %p120 = scmp.ne.s32.totalorder %s115, %s117
    %p121 = scmp.eq.s32.totalorder %s18, 0
    %p122 = por %p120, %p121
    %p123 = scmp.ne.s32.totalorder %s115, %s117
    %p124 = scmp.eq.s32.totalorder %s23, 1
    %p125 = por %p123, %p124
    %p126 = scmp.ne.s32.totalorder %s117, %s118
    %p127 = scmp.eq.s32.totalorder %s23, 0
    %p128 = por %p126, %p127
    %p129 = scmp.ne.s32.totalorder %s117, %s118
    %p130 = scmp.eq.s32.totalorder %s24, 1
    %p131 = por %p129, %p130
    %p133 = scmp.ne.s32.totalorder %s118, %s132
    %p134 = scmp.eq.s32.totalorder %s24, 0
    %p135 = por %p133, %p134
    %s137 = sadd.s32 %s136, 1
    %p140 = scmp.eq.s32.totalorder %s18, 1
    %p141 = scmp.ne.s32.totalorder %s136, %s138
    %p142 = scmp.eq.s32.totalorder %s18, 0
    %p143 = por %p141, %p142
    %p144 = scmp.ne.s32.totalorder %s136, %s138
    %p145 = scmp.eq.s32.totalorder %s23, 1
    %p146 = por %p144, %p145
    %p147 = scmp.ne.s32.totalorder %s138, %s139
    %p148 = scmp.eq.s32.totalorder %s23, 0
    %p149 = por %p147, %p148
    %p150 = scmp.ne.s32.totalorder %s138, %s139
    %p151 = scmp.eq.s32.totalorder %s24, 1
    %p152 = por %p150, %p151
    %p154 = scmp.ne.s32.totalorder %s139, %s153
    %p155 = scmp.eq.s32.totalorder %s24, 0
    %p156 = por %p154, %p155
    %s158 = sadd.s32 %s157, 1
    %p161 = scmp.eq.s32.totalorder %s18, 1
    %p162 = scmp.ne.s32.totalorder %s157, %s159
    %p163 = scmp.eq.s32.totalorder %s18, 0
    %p164 = por %p162, %p163
    %p165 = scmp.ne.s32.totalorder %s157, %s159
    %p166 = scmp.eq.s32.totalorder %s23, 1
    %p167 = por %p165, %p166
    %p168 = scmp.ne.s32.totalorder %s159, %s160
    %p169 = scmp.eq.s32.totalorder %s23, 0
    %p170 = por %p168, %p169
    %p171 = scmp.ne.s32.totalorder %s159, %s160
    %p172 = scmp.eq.s32.totalorder %s24, 1
    %p173 = por %p171, %p172
    %p175 = scmp.ne.s32.totalorder %s160, %s174
    %p176 = scmp.eq.s32.totalorder %s24, 0
    %p177 = por %p175, %p176
    %s179 = sadd.s32 %s178, 1
    %p182 = scmp.eq.s32.totalorder %s18, 1
    %p183 = scmp.ne.s32.totalorder %s178, %s180
    %p184 = scmp.eq.s32.totalorder %s18, 0
    %p185 = por %p183, %p184
    %p186 = scmp.ne.s32.totalorder %s178, %s180
    %p187 = scmp.eq.s32.totalorder %s23, 1
    %p188 = por %p186, %p187
    %p189 = scmp.ne.s32.totalorder %s180, %s181
    %p190 = scmp.eq.s32.totalorder %s23, 0
    %p191 = por %p189, %p190
    %p192 = scmp.ne.s32.totalorder %s180, %s181
    %p193 = scmp.eq.s32.totalorder %s24, 1
    %p194 = por %p192, %p193
    %p196 = scmp.ne.s32.totalorder %s181, %s195
    %p197 = scmp.eq.s32.totalorder %s24, 0
    %p198 = por %p196, %p197
    %s200 = sadd.s32 %s199, 1
    %p203 = scmp.eq.s32.totalorder %s18, 1
    %p204 = scmp.ne.s32.totalorder %s199, %s201
    %p205 = scmp.eq.s32.totalorder %s18, 0
    %p206 = por %p204, %p205
    %p207 = scmp.ne.s32.totalorder %s199, %s201
    %p208 = scmp.eq.s32.totalorder %s23, 1
    %p209 = por %p207, %p208
    %p210 = scmp.ne.s32.totalorder %s201, %s202
    %p211 = scmp.eq.s32.totalorder %s23, 0
    %p212 = por %p210, %p211
    %p213 = scmp.ne.s32.totalorder %s201, %s202
    %p214 = scmp.eq.s32.totalorder %s24, 1
    %p215 = por %p213, %p214
    %p217 = scmp.ne.s32.totalorder %s202, %s216
    %p218 = scmp.eq.s32.totalorder %s24, 0
    %p219 = por %p217, %p218
    %s221 = sadd.s32 %s220, 1
    %p224 = scmp.eq.s32.totalorder %s18, 1
    %p225 = scmp.ne.s32.totalorder %s220, %s222
    %p226 = scmp.eq.s32.totalorder %s18, 0
    %p227 = por %p225, %p226
    %p228 = scmp.ne.s32.totalorder %s220, %s222
    %p229 = scmp.eq.s32.totalorder %s23, 1
    %p230 = por %p228, %p229
    %p231 = scmp.ne.s32.totalorder %s222, %s223
    %p232 = scmp.eq.s32.totalorder %s23, 0
    %p233 = por %p231, %p232
    %p234 = scmp.ne.s32.totalorder %s222, %s223
    %p235 = scmp.eq.s32.totalorder %s24, 1
    %p236 = por %p234, %p235
    %p238 = scmp.ne.s32.totalorder %s223, %s237
    %p239 = scmp.eq.s32.totalorder %s24, 0
    %p240 = por %p238, %p239
    %s242 = sadd.s32 %s241, 1
    %p245 = scmp.eq.s32.totalorder %s18, 1
    %p246 = scmp.ne.s32.totalorder %s241, %s243
    %p247 = scmp.eq.s32.totalorder %s18, 0
    %p248 = por %p246, %p247
    %p249 = scmp.ne.s32.totalorder %s241, %s243
    %p250 = scmp.eq.s32.totalorder %s23, 1
    %p251 = por %p249, %p250
    %p252 = scmp.ne.s32.totalorder %s243, %s244
    %p253 = scmp.eq.s32.totalorder %s23, 0
    %p254 = por %p252, %p253
    %p255 = scmp.ne.s32.totalorder %s243, %s244
    %p256 = scmp.eq.s32.totalorder %s24, 1
    %p257 = por %p255, %p256
    %p259 = scmp.ne.s32.totalorder %s244, %s258
    %p260 = scmp.eq.s32.totalorder %s24, 0
    %p261 = por %p259, %p260
    %s263 = sadd.s32 %s262, 1
    %p266 = scmp.eq.s32.totalorder %s18, 1
    %p267 = scmp.ne.s32.totalorder %s262, %s264
    %p268 = scmp.eq.s32.totalorder %s18, 0
    %p269 = por %p267, %p268
    %p270 = scmp.ne.s32.totalorder %s262, %s264
    %p271 = scmp.eq.s32.totalorder %s23, 1
    %p272 = por %p270, %p271
    %p273 = scmp.ne.s32.totalorder %s264, %s265
    %p274 = scmp.eq.s32.totalorder %s23, 0
    %p275 = por %p273, %p274
    %p276 = scmp.ne.s32.totalorder %s264, %s265
    %p277 = scmp.eq.s32.totalorder %s24, 1
    %p278 = por %p276, %p277
    %p280 = scmp.ne.s32.totalorder %s265, %s279
    %p281 = scmp.eq.s32.totalorder %s24, 0
    %p282 = por %p280, %p281
    %s283 = ssub.s32 %s18, %s25
    %p284 = scmp.eq.s32.totalorder %s283, 0
    %s286 = sadd.s32 %s285, 1
    %s287 = scalar_select %p284, %s285, %s286
    %p290 = pneg %p284
    %p291 = scmp.eq.s32.totalorder %s18, 1
    %p292 = por %p290, %p291
    %p293 = scmp.ne.s32.totalorder %s285, %s288
    %p294 = scmp.eq.s32.totalorder %s18, 0
    %p295 = por %p293, %p294
    %p296 = scmp.ne.s32.totalorder %s285, %s288
    %p297 = scmp.eq.s32.totalorder %s23, 1
    %p298 = por %p296, %p297
    %p299 = scmp.ne.s32.totalorder %s288, %s289
    %p300 = scmp.eq.s32.totalorder %s23, 0
    %p301 = por %p299, %p300
    %p302 = scmp.ne.s32.totalorder %s288, %s289
    %p303 = scmp.eq.s32.totalorder %s24, 1
    %p304 = por %p302, %p303
    %p306 = scmp.ne.s32.totalorder %s289, %s305
    %p307 = scmp.eq.s32.totalorder %s24, 0
    %p308 = por %p306, %p307
    %p309 = scmp.le.s32.totalorder 1, %s18
    %p310 = scmp.lt.s32.totalorder %s18, 3
    %p311 = pnand %p309, %p310
    %p312 = pneg %p311
    // Predicated region
    $region9: #{c3_pruned_forward.1} parent=5 // pred_check
      _
    $region10: #{c3_pruned_forward.1} parent=5 // pred_check_branch
      %314 = sbr.rel (%p311) target = $region12
    $region11: #{c3_pruned_forward.1} parent=5 // pred_region
      %s315 = ssub.s32 %s18, 1
      // Predicated region
      $region13: #{c3_pruned_forward.1} parent=11 // pred_check
        %p316 = pneg %p65
      $region14: #{c3_pruned_forward.1} parent=11 // pred_check_branch
        %318 = sbr.rel (%p316) target = $region16
      $region15: #{c3_pruned_forward.1} parent=11 // pred_region
        _
      $region16: #{c3_pruned_forward.1} parent=11 // pred_fallthru
        _
      // Predicated region
      $region17: #{c3_pruned_forward.1} parent=11 // pred_check
        %p319 = pneg %p86
      $region18: #{c3_pruned_forward.1} parent=11 // pred_check_branch
        %321 = sbr.rel (%p319) target = $region20
      $region19: #{c3_pruned_forward.1} parent=11 // pred_region
        _
      $region20: #{c3_pruned_forward.1} parent=11 // pred_fallthru
        _
      // Predicated region
      $region21: #{c3_pruned_forward.1} parent=11 // pred_check
        %p322 = pneg %p107
      $region22: #{c3_pruned_forward.1} parent=11 // pred_check_branch
        %324 = sbr.rel (%p322) target = $region24
      $region23: #{c3_pruned_forward.1} parent=11 // pred_region
        _
      $region24: #{c3_pruned_forward.1} parent=11 // pred_fallthru
        _
      // Predicated region
      $region25: #{c3_pruned_forward.1} parent=11 // pred_check
        %p325 = pneg %p128
      $region26: #{c3_pruned_forward.1} parent=11 // pred_check_branch
        %327 = sbr.rel (%p325) target = $region28
      $region27: #{c3_pruned_forward.1} parent=11 // pred_region
        _
      $region28: #{c3_pruned_forward.1} parent=11 // pred_fallthru
        _
      // Predicated region
      $region29: #{c3_pruned_forward.1} parent=11 // pred_check
        %p328 = pneg %p149
      $region30: #{c3_pruned_forward.1} parent=11 // pred_check_branch
        %330 = sbr.rel (%p328) target = $region32
      $region31: #{c3_pruned_forward.1} parent=11 // pred_region
        _
      $region32: #{c3_pruned_forward.1} parent=11 // pred_fallthru
        _
      // Predicated region
      $region33: #{c3_pruned_forward.1} parent=11 // pred_check
        %p331 = pneg %p170
      $region34: #{c3_pruned_forward.1} parent=11 // pred_check_branch
        %333 = sbr.rel (%p331) target = $region36
      $region35: #{c3_pruned_forward.1} parent=11 // pred_region
        _
      $region36: #{c3_pruned_forward.1} parent=11 // pred_fallthru
        _
      // Predicated region
      $region37: #{c3_pruned_forward.1} parent=11 // pred_check
        %p334 = pneg %p191
      $region38: #{c3_pruned_forward.1} parent=11 // pred_check_branch
        %336 = sbr.rel (%p334) target = $region40
      $region39: #{c3_pruned_forward.1} parent=11 // pred_region
        _
      $region40: #{c3_pruned_forward.1} parent=11 // pred_fallthru
        _
      // Predicated region
      $region41: #{c3_pruned_forward.1} parent=11 // pred_check
        %p337 = pneg %p212
      $region42: #{c3_pruned_forward.1} parent=11 // pred_check_branch
        %339 = sbr.rel (%p337) target = $region44
      $region43: #{c3_pruned_forward.1} parent=11 // pred_region
        _
      $region44: #{c3_pruned_forward.1} parent=11 // pred_fallthru
        _
      // Predicated region
      $region45: #{c3_pruned_forward.1} parent=11 // pred_check
        %p340 = pneg %p233
      $region46: #{c3_pruned_forward.1} parent=11 // pred_check_branch
        %342 = sbr.rel (%p340) target = $region48
      $region47: #{c3_pruned_forward.1} parent=11 // pred_region
        _
      $region48: #{c3_pruned_forward.1} parent=11 // pred_fallthru
        _
      // Predicated region
      $region49: #{c3_pruned_forward.1} parent=11 // pred_check
        %p343 = pneg %p254
      $region50: #{c3_pruned_forward.1} parent=11 // pred_check_branch
        %345 = sbr.rel (%p343) target = $region52
      $region51: #{c3_pruned_forward.1} parent=11 // pred_region
        _
      $region52: #{c3_pruned_forward.1} parent=11 // pred_fallthru
        _
      // Predicated region
      $region53: #{c3_pruned_forward.1} parent=11 // pred_check
        %p346 = pneg %p275
      $region54: #{c3_pruned_forward.1} parent=11 // pred_check_branch
        %348 = sbr.rel (%p346) target = $region56
      $region55: #{c3_pruned_forward.1} parent=11 // pred_region
        _
      $region56: #{c3_pruned_forward.1} parent=11 // pred_fallthru
        _
    $region12: #{c3_pruned_forward.1} parent=5 // pred_fallthru
      _
    %p349 = scmp.lt.s32.totalorder %s18, 2
    // Predicated region
    $region57: #{c3_pruned_forward.1} parent=5 // pred_check
      %p350 = pneg %p349
    $region58: #{c3_pruned_forward.1} parent=5 // pred_check_branch
      %352 = sbr.rel (%p350) target = $region60
    $region59: #{c3_pruned_forward.1} parent=5 // pred_region
      // Predicated region
      $region61: #{c3_pruned_forward.1} parent=59 // pred_check
        %p353 = pneg %p38
      $region62: #{c3_pruned_forward.1} parent=59 // pred_check_branch
        %355 = sbr.rel (%p353) target = $region64
      $region63: #{c3_pruned_forward.1} parent=59 // pred_region
        %p356 = scmp.lt.s32.totalorder %s18, 1
        %s357 = scalar_select %p356, %s18, 1
        %s358 = smul.addr %s357, 2
        %s359 = smul.addr %s358, 2
        %s360 = scalar_lea.vmem %s0, %s359
      $region64: #{c3_pruned_forward.1} parent=59 // pred_fallthru
        _
    $region60: #{c3_pruned_forward.1} parent=5 // pred_fallthru
      _
    %p361 = scmp.le.s32.totalorder 1, %s18
    %p362 = scmp.lt.s32.totalorder %s18, 3
    %p363 = pnand %p361, %p362
    %p364 = pneg %p363
    // Predicated region
    $region65: #{c3_pruned_forward.1} parent=5 // pred_check
      _
    $region66: #{c3_pruned_forward.1} parent=5 // pred_check_branch
      %366 = sbr.rel (%p363) target = $region68
    $region67: #{c3_pruned_forward.1} parent=5 // pred_region
      %s367 = ssub.s32 %s18, 1
      %p368 = scmp.lt.s32.totalorder %s23, 1
      %s369 = scalar_select %p368, %s23, 1
      %s370 = smul.addr %s369, 2
      %s371 = smul.addr %s370, 2
      %s372 = scalar_lea.vmem %s0, %s371
      %p373 = pneg %p44
      %p374 = pneg %p41
      %p375 = pneg %p65
      %p376 = pneg %p62
      %p377 = pneg %p86
      %p378 = pneg %p83
      %p379 = pneg %p107
      %p380 = pneg %p104
      %p381 = pneg %p128
      %p382 = pneg %p125
      %p383 = pneg %p149
      %p384 = pneg %p146
      %p385 = pneg %p170
      %p386 = pneg %p167
      %p387 = pneg %p191
      %p388 = pneg %p188
      %p389 = pneg %p212
      %p390 = pneg %p209
      %p391 = pneg %p233
      %p392 = pneg %p230
      %p393 = pneg %p254
      %p394 = pneg %p251
      %p395 = pneg %p275
      %p396 = pneg %p272
      %p397 = pneg %p301
      %p398 = pneg %p298
      %p399 = scmp.lt.s32.totalorder %s23, 1
      %s400 = scalar_select %p399, %s23, 1
      %s401 = smul.addr %s400, 2
      %s402 = smul.addr %s401, 8
      %s403 = scalar_lea.vmem %s12, %s402
      %p404 = scmp.lt.s32.totalorder %s23, 1
      %s405 = scalar_select %p404, %s23, 1
      %s406 = smul.addr %s405, 2
      %s407 = smul.addr %s406, 2
      %s408 = scalar_lea.vmem %s0, %s407
      %p409 = scmp.lt.s32.totalorder %s23, 1
      %s410 = scalar_select %p409, %s23, 1
      %s411 = smul.addr %s410, 2
      %s412 = smul.addr %s411, 8
      %s413 = scalar_lea.vmem %s12, %s412
      %v415 = vld [vmem:[%s408] sm:$0xf]
      %v416 = vld [vmem:[%s1] sm:$0xf]
      %v417 = vld [vmem:[%s2] sm:$0xff]
      %419 = vset.pattern.permute.xlu0 0
      %420 = vperm.xlu0 %419, %v417
      %v421 = vpop.permute.xlu0 %420
      %v425 = vunpack.c.l.s4 1983009808
      %v426 = vunpack.c.0.s8 %v425
      %v427 = vlaneseq
      %v428 = vshrl.u32 %v427, 7
      %v429 = vsub.s32 %v426, %v428
      %v430 = vrot.slane %v415, %v429
      %v431 = vcombine.high %v430, %v430
      %vm432 = vcmask 31744
      %v434 = vsel %vm432, %v416, 0
      %vm436 = vcmask 1041408
      %v438 = vsel %vm436, %v430, 0
      %v441 = vsel %vm436, %v431, 0
      %443 = vmatprep.subr.bf16.mxu0 %v441
      %444 = vmatpush1.bf16.msra.mxu0 %v438
      %445 = vmatprep.subr.bf16.mxu0 0
      %446 = vmatpush1.bf16.msra.mxu0 0
      %447 = vmatprep.subr.bf16.mxu0 0
      %448 = vmatpush1.bf16.msra.mxu0 0
      %449 = vmatprep.subr.bf16.mxu0 0
      %450 = vmatpush1.bf16.msra.mxu0 0
      %451 = vmatprep.subr.bf16.mxu0 0
      %452 = vmatpush1.bf16.msra.mxu0 0
      %453 = vmatprep.subr.bf16.mxu0 0
      %454 = vmatpush1.bf16.msra.mxu0 0
      %455 = vmatprep.subr.bf16.mxu0 0
      %456 = vmatpush1.bf16.msra.mxu0 0
      %457 = vmatprep.subr.bf16.mxu0 0
      %458 = vmatpush1.bf16.msra.mxu0 0
      %459 = vmatprep.subr.bf16.mxu0 0
      %460 = vmatpush1.bf16.msra.mxu0 0
      %461 = vmatprep.subr.bf16.mxu0 0
      %462 = vmatpush1.bf16.msra.mxu0 0
      %463 = vmatprep.subr.bf16.mxu0 0
      %464 = vmatpush1.bf16.msra.mxu0 0
      %465 = vmatprep.subr.bf16.mxu0 0
      %466 = vmatpush1.bf16.msra.mxu0 0
      %467 = vmatprep.subr.bf16.mxu0 0
      %468 = vmatpush1.bf16.msra.mxu0 0
      %469 = vmatprep.subr.bf16.mxu0 0
      %470 = vmatpush1.bf16.msra.mxu0 0
      %471 = vmatprep.subr.bf16.mxu0 0
      %472 = vmatpush1.bf16.msra.mxu0 0
      %473 = vmatprep.subr.bf16.mxu0 0
      %474 = vmatpush1.bf16.msra.mxu0 0
      %475 = vmatprep.mubr.bf16.mxu0 0
      %476 = vmatmul.mubr.bf16.gmra.mrb[0].mxu0 %v434
      %v477 = vpop.f32.mrb[0].mxu0
      %v478 = vadd.f32 %v421, %v477
      %v479 = vpop.f32.mrb[0].mxu0
      %v480 = vadd.f32 %v421, %v479
      %v481 = vpop.f32.mrb[0].mxu0
      %v482 = vpop.f32.mrb[0].mxu0
      %483 = vdwg.mxu0
      %v484 = vxor.u32 %v478, 2147483648
      %v485 = vxor.u32 %v480, 2147483648
      %v486 = vmul.f32 %v484, 1.442695
      %v487 = vpow.pop %v486
      %v488 = vmul.f32 %v485, 1.442695
      %v489 = vpow.pop %v488
      %v490 = vadd.f32 %v487, 1.0
      %v491 = vadd.f32 %v489, 1.0
      %v492 = vrcp.pop %v490
      %v493 = vmul.f32 1.0, %v492
      %v494 = vrcp.pop %v491
      %v495 = vmul.f32 1.0, %v494
      %v496 = vmul.f32 %v478, %v493
      %v497 = vmul.f32 %v480, %v495
      %v498 = vld [vmem:[%s3] sm:$0xf]
      %v499 = vld [vmem:[%s4] sm:$0xff]
      %501 = vset.pattern.permute.xlu0 0
      %502 = vperm.xlu0 %501, %v499
      %v503 = vpop.permute.xlu0 %502
      %v506 = vsel %vm432, %v498, 0
      %508 = vmatprep.subr.bf16.mxu0 %v441
      %509 = vmatpush1.bf16.msra.mxu0 %v438
      %510 = vmatprep.subr.bf16.mxu0 0
      %511 = vmatpush1.bf16.msra.mxu0 0
      %512 = vmatprep.subr.bf16.mxu0 0
      %513 = vmatpush1.bf16.msra.mxu0 0
      %514 = vmatprep.subr.bf16.mxu0 0
      %515 = vmatpush1.bf16.msra.mxu0 0
      %516 = vmatprep.subr.bf16.mxu0 0
      %517 = vmatpush1.bf16.msra.mxu0 0
      %518 = vmatprep.subr.bf16.mxu0 0
      %519 = vmatpush1.bf16.msra.mxu0 0
      %520 = vmatprep.subr.bf16.mxu0 0
      %521 = vmatpush1.bf16.msra.mxu0 0
      %522 = vmatprep.subr.bf16.mxu0 0
      %523 = vmatpush1.bf16.msra.mxu0 0
      %524 = vmatprep.subr.bf16.mxu0 0
      %525 = vmatpush1.bf16.msra.mxu0 0
      %526 = vmatprep.subr.bf16.mxu0 0
      %527 = vmatpush1.bf16.msra.mxu0 0
      %528 = vmatprep.subr.bf16.mxu0 0
      %529 = vmatpush1.bf16.msra.mxu0 0
      %530 = vmatprep.subr.bf16.mxu0 0
      %531 = vmatpush1.bf16.msra.mxu0 0
      %532 = vmatprep.subr.bf16.mxu0 0
      %533 = vmatpush1.bf16.msra.mxu0 0
      %534 = vmatprep.subr.bf16.mxu0 0
      %535 = vmatpush1.bf16.msra.mxu0 0
      %536 = vmatprep.subr.bf16.mxu0 0
      %537 = vmatpush1.bf16.msra.mxu0 0
      %538 = vmatprep.subr.bf16.mxu0 0
      %539 = vmatpush1.bf16.msra.mxu0 0
      %540 = vmatprep.mubr.bf16.mxu0 0
      %541 = vmatmul.mubr.bf16.gmra.mrb[0].mxu0 %v506
      %v542 = vpop.f32.mrb[0].mxu0
      %v543 = vadd.f32 %v503, %v542
      %v544 = vpop.f32.mrb[0].mxu0
      %v545 = vadd.f32 %v503, %v544
      %v546 = vpop.f32.mrb[0].mxu0
      %v547 = vpop.f32.mrb[0].mxu0
      %548 = vdwg.mxu0
      %v549 = vxor.u32 %v543, 2147483648
      %v550 = vxor.u32 %v545, 2147483648
      %v551 = vmul.f32 %v549, 1.442695
      %v552 = vpow.pop %v551
      %v553 = vmul.f32 %v550, 1.442695
      %v554 = vpow.pop %v553
      %v555 = vadd.f32 %v552, 1.0
      %v556 = vadd.f32 %v554, 1.0
      %v557 = vrcp.pop %v555
      %v558 = vmul.f32 1.0, %v557
      %v559 = vrcp.pop %v556
      %v560 = vmul.f32 1.0, %v559
      %v561 = vmul.f32 %v543, %v558
      %v562 = vmul.f32 %v545, %v560
      %v563 = vlaneseq
      %v564 = vand.u32 %v563, 127
      %v565 = vadd.s32 %v564, 128
      %vm566 = vcmp.lt.s32.totalorder %v564, 0
      %v567 = vsub.s32 0, %v564
      %v568 = vsel %vm566, %v567, %v564
      %v569 = vshrl.u32 %v568, 4
      %v570 = vand.u32 %v568, 15
      %v571 = vsub.s32 0, %v570
      %v572 = vsel %vm566, %v571, %v570
      %vm573 = vcmp.lt.s32.totalorder %v565, 0
      %v574 = vsub.s32 0, %v565
      %v575 = vsel %vm573, %v574, %v565
      %v576 = vshrl.u32 %v575, 4
      %v577 = vand.u32 %v575, 15
      %v578 = vsub.s32 0, %v577
      %v579 = vsel %vm573, %v578, %v577
      %vm580 = vcmp.ne.s32.totalorder %v572, 0
      %vm581 = vcmp.ne.s32.totalorder %v579, 0
      %vm582 = vcmp.lt.s32.totalorder %v572, 0
      %vm583 = vcmp.lt.s32.totalorder %v579, 0
      %vm584 = vmand %vm582, %vm580
      %vm585 = vmand %vm583, %vm581
      %v586 = vadd.s32 %v572, 16
      %v587 = vadd.s32 %v579, 16
      %v588 = vsel %vm584, %v586, %v572
      %v589 = vsel %vm585, %v587, %v579
      %vm590 = vcmp.lt.s32.totalorder %v588, 15
      %vm591 = vcmp.lt.s32.totalorder %v589, 15
      %v592 = vsel %vm590, 1, 0
      %v593 = vsel %vm591, 1, 0
      %v594 = vcvt.s32.f32 %v592
      %v595 = vcvt.s32.f32 %v593
      %vm596 = vcmp.gt.s32.totalorder %v588, 0
      %vm597 = vcmp.gt.s32.totalorder %v589, 0
      %v598 = vsel %vm596, 1, 0
      %v599 = vsel %vm597, 1, 0
      %v600 = vcvt.s32.f32 %v598
      %v601 = vcvt.s32.f32 %v599
      %v602 = vpack.c.bf16 %v496, %v496
      %v603 = vpack.c.bf16 %v497, %v497
      %v604 = vld [vmem:[%s5] sm:$0xf]
      %v605 = vld [vmem:[%s6] sm:$0xff]
      %607 = vset.pattern.permute.xlu0 0
      %608 = vperm.xlu0 %607, %v605
      %v609 = vpop.permute.xlu0 %608
      %vm611 = vcmask 64512
      %v613 = vsel %vm611, %v604, 0
      %vm615 = vcmask 1043456
      %v617 = vsel %vm615, %v602, 0
      %v620 = vsel %vm615, %v603, 0
      %622 = vmatprep.subr.bf16.mxu0 %v620
      %623 = vmatpush1.bf16.msra.mxu0 %v617
      %624 = vmatprep.subr.bf16.mxu0 0
      %625 = vmatpush1.bf16.msra.mxu0 0
      %626 = vmatprep.subr.bf16.mxu0 0
      %627 = vmatpush1.bf16.msra.mxu0 0
      %628 = vmatprep.subr.bf16.mxu0 0
      %629 = vmatpush1.bf16.msra.mxu0 0
      %630 = vmatprep.subr.bf16.mxu0 0
      %631 = vmatpush1.bf16.msra.mxu0 0
      %632 = vmatprep.subr.bf16.mxu0 0
      %633 = vmatpush1.bf16.msra.mxu0 0
      %634 = vmatprep.subr.bf16.mxu0 0
      %635 = vmatpush1.bf16.msra.mxu0 0
      %636 = vmatprep.subr.bf16.mxu0 0
      %637 = vmatpush1.bf16.msra.mxu0 0
      %638 = vmatprep.subr.bf16.mxu0 0
      %639 = vmatpush1.bf16.msra.mxu0 0
      %640 = vmatprep.subr.bf16.mxu0 0
      %641 = vmatpush1.bf16.msra.mxu0 0
      %642 = vmatprep.subr.bf16.mxu0 0
      %643 = vmatpush1.bf16.msra.mxu0 0
      %644 = vmatprep.subr.bf16.mxu0 0
      %645 = vmatpush1.bf16.msra.mxu0 0
      %646 = vmatprep.subr.bf16.mxu0 0
      %647 = vmatpush1.bf16.msra.mxu0 0
      %648 = vmatprep.subr.bf16.mxu0 0
      %649 = vmatpush1.bf16.msra.mxu0 0
      %650 = vmatprep.subr.bf16.mxu0 0
      %651 = vmatpush1.bf16.msra.mxu0 0
      %652 = vmatprep.subr.bf16.mxu0 0
      %653 = vmatpush1.bf16.msra.mxu0 0
      %654 = vmatprep.mubr.bf16.mxu0 0
      %655 = vmatmul.mubr.bf16.gmra.mrb[0].mxu0 %v613
      %v656 = vpop.f32.mrb[0].mxu0
      %v657 = vadd.f32 %v609, %v656
      %v658 = vpop.f32.mrb[0].mxu0
      %v659 = vadd.f32 %v609, %v658
      %v660 = vpop.f32.mrb[0].mxu0
      %v661 = vpop.f32.mrb[0].mxu0
      %662 = vdwg.mxu0
      %v663 = vxor.u32 %v657, 2147483648
      %v664 = vxor.u32 %v659, 2147483648
      %v665 = vmul.f32 %v663, 1.442695
      %v666 = vpow.pop %v665
      %v667 = vmul.f32 %v664, 1.442695
      %v668 = vpow.pop %v667
      %v669 = vadd.f32 %v666, 1.0
      %v670 = vadd.f32 %v668, 1.0
      %v671 = vrcp.pop %v669
      %v672 = vmul.f32 1.0, %v671
      %v673 = vrcp.pop %v670
      %v674 = vmul.f32 1.0, %v673
      %v675 = vmul.f32 %v657, %v672
      %v676 = vmul.f32 %v659, %v674
      %v677 = vmul.f32 %v675, %v594
      %v678 = vmul.f32 %v676, %v595
      %v679 = vmul.f32 %v675, %v600
      %v680 = vmul.f32 %v676, %v601
      %683 = vrot.lane.b32.xlu0 %v677, 17
      %v684 = vpop.permute.xlu0 %683
      %685 = vrot.lane.b32.xlu0 %v678, 17
      %v686 = vpop.permute.xlu0 %685
      %vm687 = vcmask 138240
      %v688 = vsel %vm687, %v684, %v686
      %v691 = vsel %vm687, 0.0, %v684
      %694 = vrot.lane.b32.xlu0 %v675, 16
      %v695 = vpop.permute.xlu0 %694
      %696 = vrot.lane.b32.xlu0 %v676, 16
      %v697 = vpop.permute.xlu0 %696
      %vm698 = vcmask 130048
      %v699 = vsel %vm698, %v695, %v697
      %v702 = vsel %vm698, 0.0, %v695
      %705 = vrot.lane.b32.xlu0 %v679, 15
      %v706 = vpop.permute.xlu0 %705
      %707 = vrot.lane.b32.xlu0 %v680, 15
      %v708 = vpop.permute.xlu0 %707
      %vm709 = vcmask 121856
      %v710 = vsel %vm709, %v706, %v708
      %v713 = vsel %vm709, 0.0, %v706
      %714 = vrot.lane.b32.xlu0 %v677, 1
      %v715 = vpop.permute.xlu0 %714
      %716 = vrot.lane.b32.xlu0 %v678, 1
      %v717 = vpop.permute.xlu0 %716
      %vm718 = vcmask 7168
      %v719 = vsel %vm718, %v715, %v717
      %v722 = vsel %vm718, 0.0, %v715
      %723 = vrot.lane.b32.xlu0 %v679, 127
      %v724 = vpop.permute.xlu0 %723
      %725 = vrot.lane.b32.xlu0 %v680, 127
      %v726 = vpop.permute.xlu0 %725
      %vm727 = vcmask 1039360
      %v728 = vsel %vm727, %v724, %v726
      %v731 = vsel %vm727, %v726, 0.0
      %732 = vrot.lane.b32.xlu0 %v677, 113
      %v733 = vpop.permute.xlu0 %732
      %734 = vrot.lane.b32.xlu0 %v678, 113
      %v735 = vpop.permute.xlu0 %734
      %vm736 = vcmask 924672
      %v737 = vsel %vm736, %v733, %v735
      %v740 = vsel %vm736, %v735, 0.0
      %741 = vrot.lane.b32.xlu0 %v675, 112
      %v742 = vpop.permute.xlu0 %741
      %743 = vrot.lane.b32.xlu0 %v676, 112
      %v744 = vpop.permute.xlu0 %743
      %vm745 = vcmask 916480
      %v746 = vsel %vm745, %v742, %v744
      %v749 = vsel %vm745, %v744, 0.0
      %750 = vrot.lane.b32.xlu0 %v679, 111
      %v751 = vpop.permute.xlu0 %750
      %752 = vrot.lane.b32.xlu0 %v680, 111
      %v753 = vpop.permute.xlu0 %752
      %vm754 = vcmask 908288
      %v755 = vsel %vm754, %v751, %v753
      %v758 = vsel %vm754, %v753, 0.0
      %v759 = vpack.c.bf16 %v702, %v691
      %v760 = vpack.c.bf16 %v699, %v688
      %v761 = vpack.c.bf16 %v722, %v713
      %v762 = vpack.c.bf16 %v719, %v710
      %v763 = vpack.c.bf16 %v728, %v675
      %v764 = vpack.c.bf16 %v731, %v676
      %v765 = vpack.c.bf16 %v746, %v737
      %v766 = vpack.c.bf16 %v749, %v740
      %v767 = vpack.c.bf16 %v755, %v755
      %v768 = vpack.c.bf16 %v758, %v758
      %v769 = vld [vmem:[%s7] sm:$0xf]
      %v770 = vld [vmem:[%s8] sm:$0xff]
      %772 = vset.pattern.permute.xlu0 0
      %773 = vperm.xlu0 %772, %v770
      %v774 = vpop.permute.xlu0 %773
      %vm776 = vcmask 588800
      %v778 = vsel %vm776, %v769, 0
      %v781 = vsel %vm615, %v767, 0
      %v784 = vsel %vm615, %v768, 0
      %786 = vmatprep.subr.bf16.mxu0 %v760
      %787 = vmatpush1.bf16.msra.mxu0 %v759
      %788 = vmatprep.subr.bf16.mxu0 %v762
      %789 = vmatpush1.bf16.msra.mxu0 %v761
      %790 = vmatprep.subr.bf16.mxu0 %v764
      %791 = vmatpush1.bf16.msra.mxu0 %v763
      %792 = vmatprep.subr.bf16.mxu0 %v766
      %793 = vmatpush1.bf16.msra.mxu0 %v765
      %794 = vmatprep.subr.bf16.mxu0 %v784
      %795 = vmatpush1.bf16.msra.mxu0 %v781
      %796 = vmatprep.subr.bf16.mxu0 0
      %797 = vmatpush1.bf16.msra.mxu0 0
      %798 = vmatprep.subr.bf16.mxu0 0
      %799 = vmatpush1.bf16.msra.mxu0 0
      %800 = vmatprep.subr.bf16.mxu0 0
      %801 = vmatpush1.bf16.msra.mxu0 0
      %802 = vmatprep.subr.bf16.mxu0 0
      %803 = vmatpush1.bf16.msra.mxu0 0
      %804 = vmatprep.subr.bf16.mxu0 0
      %805 = vmatpush1.bf16.msra.mxu0 0
      %806 = vmatprep.subr.bf16.mxu0 0
      %807 = vmatpush1.bf16.msra.mxu0 0
      %808 = vmatprep.subr.bf16.mxu0 0
      %809 = vmatpush1.bf16.msra.mxu0 0
      %810 = vmatprep.subr.bf16.mxu0 0
      %811 = vmatpush1.bf16.msra.mxu0 0
      %812 = vmatprep.subr.bf16.mxu0 0
      %813 = vmatpush1.bf16.msra.mxu0 0
      %814 = vmatprep.subr.bf16.mxu0 0
      %815 = vmatpush1.bf16.msra.mxu0 0
      %816 = vmatprep.subr.bf16.mxu0 0
      %817 = vmatpush1.bf16.msra.mxu0 0
      %818 = vmatprep.mubr.bf16.mxu0 0
      %819 = vmatmul.mubr.bf16.gmra.mrb[0].mxu0 %v778
      %v820 = vpop.f32.mrb[0].mxu0
      %v821 = vadd.f32 %v774, %v820
      %v822 = vpop.f32.mrb[0].mxu0
      %v823 = vadd.f32 %v774, %v822
      %v824 = vpop.f32.mrb[0].mxu0
      %v825 = vpop.f32.mrb[0].mxu0
      %826 = vdwg.mxu0
      %v827 = vxor.u32 %v821, 2147483648
      %v828 = vxor.u32 %v823, 2147483648
      %v829 = vmul.f32 %v827, 1.442695
      %v830 = vpow.pop %v829
      %v831 = vmul.f32 %v828, 1.442695
      %v832 = vpow.pop %v831
      %v833 = vadd.f32 %v830, 1.0
      %v834 = vadd.f32 %v832, 1.0
      %v835 = vrcp.pop %v833
      %v836 = vmul.f32 1.0, %v835
      %v837 = vrcp.pop %v834
      %v838 = vmul.f32 1.0, %v837
      %v839 = vmul.f32 %v821, %v836
      %v840 = vmul.f32 %v823, %v838
      %v841 = vadd.f32 %v496, %v839
      %v842 = vadd.f32 %v497, %v840
      %v843 = vld [vmem:[%s9] sm:$0xf]
      %v844 = vpack.c.bf16 %v841, %v841
      %v845 = vpack.c.bf16 %v842, %v842
      %v846 = vld [vmem:[%s10] sm:$0xf]
      %v847 = vpack.c.bf16 %v561, %v561
      %v848 = vpack.c.bf16 %v562, %v562
      %v850 = vsel %vm611, %v846, 0
      %v853 = vsel %vm615, %v847, 0
      %v856 = vsel %vm615, %v848, 0
      %858 = vmatprep.subr.bf16.mxu0 %v856
      %859 = vmatpush1.bf16.msra.mxu0 %v853
      %860 = vmatprep.subr.bf16.mxu0 0
      %861 = vmatpush1.bf16.msra.mxu0 0
      %862 = vmatprep.subr.bf16.mxu0 0
      %863 = vmatpush1.bf16.msra.mxu0 0
      %864 = vmatprep.subr.bf16.mxu0 0
      %865 = vmatpush1.bf16.msra.mxu0 0
      %866 = vmatprep.subr.bf16.mxu0 0
      %867 = vmatpush1.bf16.msra.mxu0 0
      %868 = vmatprep.subr.bf16.mxu0 0
      %869 = vmatpush1.bf16.msra.mxu0 0
      %870 = vmatprep.subr.bf16.mxu0 0
      %871 = vmatpush1.bf16.msra.mxu0 0
      %872 = vmatprep.subr.bf16.mxu0 0
      %873 = vmatpush1.bf16.msra.mxu0 0
      %874 = vmatprep.subr.bf16.mxu0 0
      %875 = vmatpush1.bf16.msra.mxu0 0
      %876 = vmatprep.subr.bf16.mxu0 0
      %877 = vmatpush1.bf16.msra.mxu0 0
      %878 = vmatprep.subr.bf16.mxu0 0
      %879 = vmatpush1.bf16.msra.mxu0 0
      %880 = vmatprep.subr.bf16.mxu0 0
      %881 = vmatpush1.bf16.msra.mxu0 0
      %882 = vmatprep.subr.bf16.mxu0 0
      %883 = vmatpush1.bf16.msra.mxu0 0
      %884 = vmatprep.subr.bf16.mxu0 0
      %885 = vmatpush1.bf16.msra.mxu0 0
      %886 = vmatprep.subr.bf16.mxu0 0
      %887 = vmatpush1.bf16.msra.mxu0 0
      %888 = vmatprep.subr.bf16.mxu0 0
      %889 = vmatpush1.bf16.msra.mxu0 0
      %890 = vmatprep.mubr.bf16.mxu0 0
      %891 = vmatmul.mubr.bf16.gmra.mrb[0].mxu0 %v850
      %v892 = vpop.f32.mrb[0].mxu0
      %v893 = vadd.f32 0.0, %v892
      %v894 = vpop.f32.mrb[0].mxu0
      %v895 = vadd.f32 0.0, %v894
      %v896 = vpop.f32.mrb[0].mxu0
      %v897 = vpop.f32.mrb[0].mxu0
      %898 = vdwg.mxu0
      %v900 = vsel %vm611, %v843, 0
      %v903 = vsel %vm615, %v844, 0
      %v906 = vsel %vm615, %v845, 0
      %908 = vmatprep.subr.bf16.mxu0 %v906
      %909 = vmatpush1.bf16.msra.mxu0 %v903
      %910 = vmatprep.subr.bf16.mxu0 0
      %911 = vmatpush1.bf16.msra.mxu0 0
      %912 = vmatprep.subr.bf16.mxu0 0
      %913 = vmatpush1.bf16.msra.mxu0 0
      %914 = vmatprep.subr.bf16.mxu0 0
      %915 = vmatpush1.bf16.msra.mxu0 0
      %916 = vmatprep.subr.bf16.mxu0 0
      %917 = vmatpush1.bf16.msra.mxu0 0
      %918 = vmatprep.subr.bf16.mxu0 0
      %919 = vmatpush1.bf16.msra.mxu0 0
      %920 = vmatprep.subr.bf16.mxu0 0
      %921 = vmatpush1.bf16.msra.mxu0 0
      %922 = vmatprep.subr.bf16.mxu0 0
      %923 = vmatpush1.bf16.msra.mxu0 0
      %924 = vmatprep.subr.bf16.mxu0 0
      %925 = vmatpush1.bf16.msra.mxu0 0
      %926 = vmatprep.subr.bf16.mxu0 0
      %927 = vmatpush1.bf16.msra.mxu0 0
      %928 = vmatprep.subr.bf16.mxu0 0
      %929 = vmatpush1.bf16.msra.mxu0 0
      %930 = vmatprep.subr.bf16.mxu0 0
      %931 = vmatpush1.bf16.msra.mxu0 0
      %932 = vmatprep.subr.bf16.mxu0 0
      %933 = vmatpush1.bf16.msra.mxu0 0
      %934 = vmatprep.subr.bf16.mxu0 0
      %935 = vmatpush1.bf16.msra.mxu0 0
      %936 = vmatprep.subr.bf16.mxu0 0
      %937 = vmatpush1.bf16.msra.mxu0 0
      %938 = vmatprep.subr.bf16.mxu0 0
      %939 = vmatpush1.bf16.msra.mxu0 0
      %940 = vmatprep.mubr.bf16.mxu0 0
      %941 = vmatmul.mubr.bf16.gmra.mrb[0].mxu0 %v900
      %v942 = vpop.f32.mrb[0].mxu0
      %v943 = vadd.f32 %v893, %v942
      %v944 = vpop.f32.mrb[0].mxu0
      %v945 = vadd.f32 %v895, %v944
      %v946 = vpop.f32.mrb[0].mxu0
      %v947 = vpop.f32.mrb[0].mxu0
      %948 = vdwg.mxu0
      %v949 = vld [vmem:[%s11] sm:$0xff]
      %951 = vset.pattern.permute.xlu0 0
      %952 = vperm.xlu0 %951, %v949
      %v953 = vpop.permute.xlu0 %952
      %v955 = vadd.f32 %v943, %v953
      %v956 = vadd.f32 %v945, %v953
      %v957 = vxor.u32 %v955, 2147483648
      %v958 = vxor.u32 %v956, 2147483648
      %v959 = vmul.f32 %v957, 1.442695
      %v960 = vpow.pop %v959
      %v961 = vmul.f32 %v958, 1.442695
      %v962 = vpow.pop %v961
      %v963 = vadd.f32 %v960, 1.0
      %v964 = vadd.f32 %v962, 1.0
      %v965 = vrcp.pop %v963
      %v966 = vmul.f32 1.0, %v965
      %v967 = vrcp.pop %v964
      %v968 = vmul.f32 1.0, %v967
      %v969 = vmul.f32 %v955, %v966
      %v970 = vmul.f32 %v956, %v968
      %971 = vst [vmem:[%s413] sm:$0xff] %v969
      %972 = vst [vmem:[%s413 + $0x8] sm:$0xff] %v970
      %p973 = scmp.lt.s32.totalorder %s23, 1
      %s974 = scalar_select %p973, %s23, 1
      %s975 = smul.addr %s974, 2
      %s976 = smul.addr %s975, 8
      %s977 = scalar_lea.vmem %s12, %s976
      // Predicated region
      $region69: #{c3_pruned_forward.1} parent=67 // pred_check
        %p978 = pneg %p298
      $region70: #{c3_pruned_forward.1} parent=67 // pred_check_branch
        %980 = sbr.rel (%p978) target = $region72
      $region71: #{c3_pruned_forward.1} parent=67 // pred_region
        _
      $region72: #{c3_pruned_forward.1} parent=67 // pred_fallthru
        _
    $region68: #{c3_pruned_forward.1} parent=5 // pred_fallthru
      _
    %p981 = scmp.le.s32.totalorder 2, %s18
    // Predicated region
    $region73: #{c3_pruned_forward.1} parent=5 // pred_check
      %p982 = pneg %p981
    $region74: #{c3_pruned_forward.1} parent=5 // pred_check_branch
      %984 = sbr.rel (%p982) target = $region76
    $region75: #{c3_pruned_forward.1} parent=5 // pred_region
      %s985 = ssub.s32 %s18, 2
      // Predicated region
      $region77: #{c3_pruned_forward.1} parent=75 // pred_check
        %p986 = pneg %p304
      $region78: #{c3_pruned_forward.1} parent=75 // pred_check_branch
        %988 = sbr.rel (%p986) target = $region80
      $region79: #{c3_pruned_forward.1} parent=75 // pred_region
        %p989 = scmp.lt.s32.totalorder %s24, 1
        %s990 = scalar_select %p989, %s24, 1
        %s991 = smul.addr %s990, 2
        %s992 = smul.addr %s991, 8
        %s993 = scalar_lea.vmem %s12, %s992
      $region80: #{c3_pruned_forward.1} parent=75 // pred_fallthru
        _
    $region76: #{c3_pruned_forward.1} parent=5 // pred_fallthru
      _
  $region6: #{c3_pruned_forward.1} parent=0 // loop_footer
    %s22 = sadd.s32 1, %s18
  $region7: #{c3_pruned_forward.1} parent=0 // loop_footer_branch
    %17 = sbr.rel target = $region3
  $region8: #{c3_pruned_forward.1} parent=0 // loop_exit
    _

</llo_original>
